<compile_context>
chip_gen: v5e
topology: v5e:2x2
jax: 0.10.0
libtpu: 0.0.40
codegen_flags: <defaults>
</compile_context>

<pallas_src>
import functools

import jax
import jax.numpy as jnp
from jax import lax
from jax.experimental import pallas as pl
from jax.experimental.pallas import tpu as pltpu

LANE = 128            # lane width (last dim)
SUB = 8               # sublane tile
CHUNK_ROWS = 64       # 64x128 f32 = 8 vregs per live temporary in the chunk loop
MAX_TILE_ROWS = 2048  # 2048x128 f32 = 1 MiB per input block per pipeline buffer
NUM_SLICES = 2        # leading "parallel" grid axis (megacore / v7x 2-TC split)
NEG_LARGE = -1e30     # f32 sentinel applied AFTER the f32 cast: exp(-|x|)=0,
                      # max(x,0)=0, x*0=0  -> masked elements contribute exactly 0


def _round_up(a, b):
    return -(-a // b) * b


def _bce_dice_kernel(pred_ref, tgt_ref, acc_ref, *, tile_rows, chunk_rows,
                     n_valid_rows, blocks_per_slice, may_mask, unroll):
    """Accumulate [sum(p*t), sum(p+t), sum(bce)] as (8,128) per-lane partial
    sums into the slice-resident output block (resident across the k axis)."""
    s = pl.program_id(0)
    k = pl.program_id(1)

    @pl.when(k == 0)
    def _():
        acc_ref[...] = jnp.zeros_like(acc_ref)

    n_chunks = tile_rows // chunk_rows
    # UNclamped logical row offset of this grid step (the index_map clamps the
    # DMA; the mask must use the logical position so over-covering steps that
    # re-read the last real tile contribute exactly zero).
    base_row = (s * blocks_per_slice + k) * tile_rows

    def accumulate(masked):
        if masked:
            row_iota = lax.broadcasted_iota(jnp.int32, (chunk_rows, LANE), 0)
            row_limit = n_valid_rows - base_row   # traced scalar, loop-invariant

        def chunk(c, carry):
            inter_acc, pt_acc, bce_acc = carry
            r0 = pl.multiple_of(c * chunk_rows, chunk_rows)
            x = pred_ref[pl.ds(r0, chunk_rows), :].astype(jnp.float32)   # logits
            t = tgt_ref[pl.ds(r0, chunk_rows), :].astype(jnp.float32)
            if masked:
                valid = (r0 + row_iota) < row_limit
                x = jnp.where(valid, x, NEG_LARGE)   # mask inputs: 2 selects only
                t = jnp.where(valid, t, 0.0)

            # One exp, one reciprocal, one log1p per element (3 EUP pushes):
            e = jnp.exp(-jnp.abs(x))
            r = pl.reciprocal(1.0 + e)               # exact (approx=False)
            p = jnp.where(x >= 0.0, r, e * r)        # sigmoid(x), reusing e
            # Numerically stable BCE-with-logits: max(x,0) - x*t + log1p(e)
            bce = jnp.maximum(x, 0.0) - x * t + jnp.log1p(e)

            def fold(v):
                # (chunk_rows,128) -> (8,128) per-lane partial sums; VPU adds.
                return jnp.sum(v.reshape(chunk_rows // SUB, SUB, LANE), axis=0)

            return (inter_acc + fold(p * t),
                    pt_acc + fold(p + t),
                    bce_acc + fold(bce))

        zero = jnp.zeros((SUB, LANE), jnp.float32)
        inter_acc, pt_acc, bce_acc = lax.fori_loop(
            0, n_chunks, chunk, (zero, zero, zero), unroll=unroll)
        acc_ref[0, 0] += inter_acc
        acc_ref[0, 1] += pt_acc
        acc_ref[0, 2] += bce_acc

    if may_mask:
        needs_mask = base_row + tile_rows > n_valid_rows

        @pl.when(needs_mask)
        def _():
            accumulate(masked=True)        # boundary / over-covering step only

        @pl.when(jnp.logical_not(needs_mask))
        def _():
            accumulate(masked=False)       # interior fast path
    else:
        accumulate(masked=False)


def bce_dice_loss(pred, target, smooth=1.0):
    """Pallas implementation of BCEDiceLoss.forward(pred, target) -> scalar f32."""
    assert pred.shape == target.shape
    total = pred.size

    pred_flat = pred.reshape(-1)     # native dtype; cast to f32 per-tile in VMEM
    tgt_flat = target.reshape(-1)

    tail = total % LANE              # <128-element ragged tail -> JAX epilogue
    n_main = total - tail
    n_rows = n_main // LANE

    inter_s = jnp.float32(0.0)
    pt_s = jnp.float32(0.0)
    bce_s = jnp.float32(0.0)

    if n_rows > 0:
        if n_rows >= CHUNK_ROWS:
            tile_rows = min(MAX_TILE_ROWS, _round_up(n_rows, CHUNK_ROWS))
            chunk_rows = CHUNK_ROWS
        else:
            tile_rows = _round_up(n_rows, SUB)
            chunk_rows = tile_rows
        n_blocks = pl.cdiv(n_rows, tile_rows)
        num_slices = min(NUM_SLICES, n_blocks)     # don't over-split tiny inputs
        blocks_per_slice = pl.cdiv(n_blocks, num_slices)
        may_mask = (num_slices * blocks_per_slice * tile_rows) != n_rows
        n_chunks = tile_rows // chunk_rows

        pred2d = pred_flat[:n_main].reshape(n_rows, LANE)
        tgt2d = tgt_flat[:n_main].reshape(n_rows, LANE)

        def in_map(si, ki):
            # Clamp so over-covering (fully masked) steps re-read the last real
            # tile instead of pointing wholly out of bounds.
            b = si * blocks_per_slice + ki
            return (jnp.minimum(b, n_blocks - 1), 0)

        kernel = functools.partial(
            _bce_dice_kernel,
            tile_rows=tile_rows,
            chunk_rows=chunk_rows,
            n_valid_rows=n_rows,
            blocks_per_slice=blocks_per_slice,
            may_mask=may_mask,
            unroll=min(n_chunks, 4))

        cost = pl.CostEstimate(
            flops=14 * n_main,
            transcendentals=3 * n_main,
            bytes_accessed=n_main * (pred.dtype.itemsize + target.dtype.itemsize)
            + num_slices * 3 * SUB * LANE * 4)

        partials = pl.pallas_call(
            kernel,
            out_shape=jax.ShapeDtypeStruct((num_slices, 3, SUB, LANE),
                                           jnp.float32),
            grid_spec=pltpu.PrefetchScalarGridSpec(
                num_scalar_prefetch=0,
                grid=(num_slices, blocks_per_slice),
                in_specs=[
                    pl.BlockSpec((tile_rows, LANE), in_map),
                    pl.BlockSpec((tile_rows, LANE), in_map),
                ],
                out_specs=pl.BlockSpec((1, 3, SUB, LANE),
                                       lambda si, ki: (si, 0, 0, 0)),
            ),
            # "parallel" is safe on 1-TC chips (v5e/v6e) and allows megacore
            # sharding; pltpu.CORE_PARALLEL / pl.core_map would guarantee the
            # 2-TC split on v7x but requires the axis to match the core count,
            # so it is left as a deployment-time knob.
            compiler_params=pltpu.CompilerParams(
                dimension_semantics=("parallel", "arbitrary"),
                vmem_limit_bytes=32 * 1024 * 1024),
            cost_estimate=cost,
        )(pred2d, tgt2d)

        # Tiny epilogue in plain JAX: one cross-lane reduce + scalar math.
        sums = jnp.sum(partials, axis=(0, 2, 3))        # (3,)
        inter_s, pt_s, bce_s = sums[0], sums[1], sums[2]

    if tail:
        xt = pred_flat[n_main:].astype(jnp.float32)
        tt = tgt_flat[n_main:].astype(jnp.float32)
        et = jnp.exp(-jnp.abs(xt))
        rt = 1.0 / (1.0 + et)
        ptl = jnp.where(xt >= 0.0, rt, et * rt)
        btl = jnp.maximum(xt, 0.0) - xt * tt + jnp.log1p(et)
        inter_s = inter_s + jnp.sum(ptl * tt)
        pt_s = pt_s + jnp.sum(ptl + tt)
        bce_s = bce_s + jnp.sum(btl)

    dice = (2.0 * inter_s + smooth) / (pt_s + smooth)
    bce_mean = bce_s / total
    return bce_mean + (1.0 - dice)


def bce_dice_loss_ref(pred, target, smooth=1.0):
    """Pure-JAX reference for BCEDiceLoss.forward."""
    x = pred.astype(jnp.float32)
    t = target.astype(jnp.float32)
    p = jax.nn.sigmoid(x)
    inter = jnp.sum(p * t)
    dice = (2.0 * inter + smooth) / (jnp.sum(p) + jnp.sum(t) + smooth)
    bce = jnp.mean(jnp.maximum(x, 0.0) - x * t + jnp.log1p(jnp.exp(-jnp.abs(x))))
    return bce + (1.0 - dice)


if __name__ == "__main__":
    key = jax.random.PRNGKey(0)
    ks = jax.random.split(key, 6)

    # 1) Small NCHW case (typical segmentation logits/targets).
    pred1 = jax.random.normal(ks[0], (2, 4, 16, 16), dtype=jnp.float32)
    tgt1 = (jax.random.uniform(ks[1], (2, 4, 16, 16)) > 0.5).astype(jnp.float32)
    out1 = jax.block_until_ready(bce_dice_loss(pred1, tgt1, smooth=1.0))
    ref1 = jax.block_until_ready(bce_dice_loss_ref(pred1, tgt1, smooth=1.0))
    assert jnp.allclose(out1, ref1, atol=2e-5, rtol=2e-4), (out1, ref1)

    # 2) Ragged case: exercises the in-kernel boundary-row mask and the
    #    <128-element pure-JAX tail (no concatenate/pad copies anywhere).
    pred2 = jax.random.normal(ks[2], (2, 4, 15, 17), dtype=jnp.float32)
    tgt2 = (jax.random.uniform(ks[3], (2, 4, 15, 17)) > 0.5).astype(jnp.float32)
    out2 = jax.block_until_ready(bce_dice_loss(pred2, tgt2, smooth=1.0))
    ref2 = jax.block_until_ready(bce_dice_loss_ref(pred2, tgt2, smooth=1.0))
    assert jnp.allclose(out2, ref2, atol=2e-5, rtol=2e-4), (out2, ref2)

    # 3) Multi-tile case: exercises the 2-slice parallel grid, the clamped
    #    index map, and the pl.when fast-path / masked-path split.
    pred3 = jax.random.normal(ks[4], (4, 4, 160, 160), dtype=jnp.float32)
    tgt3 = (jax.random.uniform(ks[5], (4, 4, 160, 160)) > 0.5).astype(jnp.float32)
    out3 = jax.block_until_ready(bce_dice_loss(pred3, tgt3, smooth=1.0))
    ref3 = jax.block_until_ready(bce_dice_loss_ref(pred3, tgt3, smooth=1.0))
    assert jnp.allclose(out3, ref3, atol=2e-5, rtol=2e-4), (out3, ref3)

    print("KERNEL_OK")
</pallas_src>

<mosaic_0001>
module attributes {stable_mosaic.version = 11 : i64} {
  func.func @_bce_dice_kernel(%arg0: i32, %arg1: i32, %arg2: memref<16x128xf32, #tpu.memory_space<vmem>>, %arg3: memref<16x128xf32, #tpu.memory_space<vmem>>, %arg4: memref<1x3x8x128xf32, #tpu.memory_space<vmem>>) attributes {dimension_semantics = [#tpu.dimension_semantics<parallel>, #tpu.dimension_semantics<arbitrary>], iteration_bounds = array<i64: 1, 1>, scalar_prefetch = 0 : i64, scratch_operands = 0 : i64, tpu.core_type = #tpu.core_type<tc>, window_params = [{transform_indices = @transform_0, window_bounds = array<i64: 16, 128>}, {transform_indices = @transform_1, window_bounds = array<i64: 16, 128>}, {transform_indices = @transform_2, window_bounds = array<i64: 1, 3, 8, 128>}]} {
    %c0_i32 = arith.constant 0 : i32
    %0 = arith.cmpi eq, %arg1, %c0_i32 : i32
    %1 = arith.extui %0 : i1 to i32
    %c0_i32_0 = arith.constant 0 : i32
    %2 = arith.cmpi ne, %1, %c0_i32_0 : i32
    scf.if %2 {
      %cst_32 = arith.constant 0.000000e+00 : f32
      %56 = vector.broadcast %cst_32 : f32 to vector<1x3x8x128xf32>
      %c0_33 = arith.constant 0 : index
      %c0_34 = arith.constant 0 : index
      %c0_35 = arith.constant 0 : index
      %c0_36 = arith.constant 0 : index
      %57 = vector.load %arg4[%c0_33, %c0_34, %c0_35, %c0_36] : memref<1x3x8x128xf32, #tpu.memory_space<vmem>>, vector<1x3x8x128xf32>
      tpu.vector_store %arg4[%c0_33, %c0_34, %c0_35, %c0_36], %56 {strides = array<i32>} : memref<1x3x8x128xf32, #tpu.memory_space<vmem>>, vector<1x3x8x128xf32>,
    } else {
    }
    %cst = arith.constant 0.000000e+00 : f32
    %3 = vector.broadcast %cst : f32 to vector<8x128xf32>
    %c0_i32_1 = arith.constant 0 : i32
    %c16_i32 = arith.constant 16 : i32
    %4 = arith.muli %c0_i32_1, %c16_i32 : i32
    %5 = tpu.assume_multiple %4, 16 : i32
    %6 = arith.index_cast %5 : i32 to index
    %c0 = arith.constant 0 : index
    %7 = vector.load %arg2[%6, %c0] : memref<16x128xf32, #tpu.memory_space<vmem>>, vector<16x128xf32>
    %8 = arith.index_cast %5 : i32 to index
    %c0_2 = arith.constant 0 : index
    %9 = vector.load %arg3[%8, %c0_2] : memref<16x128xf32, #tpu.memory_space<vmem>>, vector<16x128xf32>
    %10 = math.absf %7 : vector<16x128xf32>
    %cst_3 = arith.constant 0.000000e+00 : f32
    %11 = vector.broadcast %cst_3 : f32 to vector<16x128xf32>
    %12 = arith.subf %11, %10 : vector<16x128xf32>
    %13 = math.exp %12 : vector<16x128xf32>
    %cst_4 = arith.constant 1.000000e+00 : f32
    %14 = vector.broadcast %cst_4 : f32 to vector<16x128xf32>
    %15 = arith.addf %14, %13 : vector<16x128xf32>
    %16 = tpu.reciprocal %15 : vector<16x128xf32> -> vector<16x128xf32>
    %cst_5 = arith.constant 0.000000e+00 : f32
    %17 = vector.broadcast %cst_5 : f32 to vector<16x128xf32>
    %18 = arith.cmpf oge, %7, %17 : vector<16x128xf32>
    %19 = arith.mulf %13, %16 : vector<16x128xf32>
    %20 = arith.select %18, %16, %19 : vector<16x128xi1>, vector<16x128xf32>
    %cst_6 = arith.constant 0.000000e+00 : f32
    %21 = vector.broadcast %cst_6 : f32 to vector<16x128xf32>
    %22 = arith.maximumf %7, %21 : vector<16x128xf32>
    %23 = arith.mulf %7, %9 : vector<16x128xf32>
    %24 = arith.subf %22, %23 : vector<16x128xf32>
    %25 = math.log1p %13 : vector<16x128xf32>
    %26 = arith.addf %24, %25 : vector<16x128xf32>
    %27 = arith.mulf %20, %9 : vector<16x128xf32>
    %28 = vector.shape_cast %27 : vector<16x128xf32> to vector<2x8x128xf32>
    %cst_7 = arith.constant dense<0.000000e+00> : vector<8x128xf32>
    %29 = vector.multi_reduction <add>, %28, %cst_7 [0] : vector<2x8x128xf32> to vector<8x128xf32>
    %30 = arith.addf %3, %29 : vector<8x128xf32>
    %31 = arith.addf %20, %9 : vector<16x128xf32>
    %32 = vector.shape_cast %31 : vector<16x128xf32> to vector<2x8x128xf32>
    %cst_8 = arith.constant dense<0.000000e+00> : vector<8x128xf32>
    %33 = vector.multi_reduction <add>, %32, %cst_8 [0] : vector<2x8x128xf32> to vector<8x128xf32>
    %34 = arith.addf %3, %33 : vector<8x128xf32>
    %35 = vector.shape_cast %26 : vector<16x128xf32> to vector<2x8x128xf32>
    %cst_9 = arith.constant dense<0.000000e+00> : vector<8x128xf32>
    %36 = vector.multi_reduction <add>, %35, %cst_9 [0] : vector<2x8x128xf32> to vector<8x128xf32>
    %37 = arith.addf %3, %36 : vector<8x128xf32>
    %c1_i32 = arith.constant 1 : i32
    %c0_10 = arith.constant 0 : index
    %c0_11 = arith.constant 0 : index
    %c0_12 = arith.constant 0 : index
    %c0_13 = arith.constant 0 : index
    %38 = vector.load %arg4[%c0_10, %c0_11, %c0_12, %c0_13] : memref<1x3x8x128xf32, #tpu.memory_space<vmem>>, vector<1x1x8x128xf32>
    %39 = vector.shape_cast %38 : vector<1x1x8x128xf32> to vector<8x128xf32>
    %40 = arith.addf %39, %30 : vector<8x128xf32>
    %c0_14 = arith.constant 0 : index
    %c0_15 = arith.constant 0 : index
    %c0_16 = arith.constant 0 : index
    %c0_17 = arith.constant 0 : index
    %41 = vector.load %arg4[%c0_14, %c0_15, %c0_16, %c0_17] : memref<1x3x8x128xf32, #tpu.memory_space<vmem>>, vector<1x1x8x128xf32>
    %42 = vector.shape_cast %41 : vector<1x1x8x128xf32> to vector<8x128xf32>
    %43 = vector.shape_cast %40 : vector<8x128xf32> to vector<1x1x8x128xf32>
    tpu.vector_store %arg4[%c0_14, %c0_15, %c0_16, %c0_17], %43 {strides = array<i32>} : memref<1x3x8x128xf32, #tpu.memory_space<vmem>>, vector<1x1x8x128xf32>,
    %c0_18 = arith.constant 0 : index
    %c1 = arith.constant 1 : index
    %c0_19 = arith.constant 0 : index
    %c0_20 = arith.constant 0 : index
    %44 = vector.load %arg4[%c0_18, %c1, %c0_19, %c0_20] : memref<1x3x8x128xf32, #tpu.memory_space<vmem>>, vector<1x1x8x128xf32>
    %45 = vector.shape_cast %44 : vector<1x1x8x128xf32> to vector<8x128xf32>
    %46 = arith.addf %45, %34 : vector<8x128xf32>
    %c0_21 = arith.constant 0 : index
    %c1_22 = arith.constant 1 : index
    %c0_23 = arith.constant 0 : index
    %c0_24 = arith.constant 0 : index
    %47 = vector.load %arg4[%c0_21, %c1_22, %c0_23, %c0_24] : memref<1x3x8x128xf32, #tpu.memory_space<vmem>>, vector<1x1x8x128xf32>
    %48 = vector.shape_cast %47 : vector<1x1x8x128xf32> to vector<8x128xf32>
    %49 = vector.shape_cast %46 : vector<8x128xf32> to vector<1x1x8x128xf32>
    tpu.vector_store %arg4[%c0_21, %c1_22, %c0_23, %c0_24], %49 {strides = array<i32>} : memref<1x3x8x128xf32, #tpu.memory_space<vmem>>, vector<1x1x8x128xf32>,
    %c0_25 = arith.constant 0 : index
    %c2 = arith.constant 2 : index
    %c0_26 = arith.constant 0 : index
    %c0_27 = arith.constant 0 : index
    %50 = vector.load %arg4[%c0_25, %c2, %c0_26, %c0_27] : memref<1x3x8x128xf32, #tpu.memory_space<vmem>>, vector<1x1x8x128xf32>
    %51 = vector.shape_cast %50 : vector<1x1x8x128xf32> to vector<8x128xf32>
    %52 = arith.addf %51, %37 : vector<8x128xf32>
    %c0_28 = arith.constant 0 : index
    %c2_29 = arith.constant 2 : index
    %c0_30 = arith.constant 0 : index
    %c0_31 = arith.constant 0 : index
    %53 = vector.load %arg4[%c0_28, %c2_29, %c0_30, %c0_31] : memref<1x3x8x128xf32, #tpu.memory_space<vmem>>, vector<1x1x8x128xf32>
    %54 = vector.shape_cast %53 : vector<1x1x8x128xf32> to vector<8x128xf32>
    %55 = vector.shape_cast %52 : vector<8x128xf32> to vector<1x1x8x128xf32>
    tpu.vector_store %arg4[%c0_28, %c2_29, %c0_30, %c0_31], %55 {strides = array<i32>} : memref<1x3x8x128xf32, #tpu.memory_space<vmem>>, vector<1x1x8x128xf32>,
    return
  }
  func.func @transform_0(%arg0: i32, %arg1: i32) -> (i32, i32) {
    %c1_i32 = arith.constant 1 : i32
    %0 = arith.muli %arg0, %c1_i32 : i32
    %1 = arith.addi %0, %arg1 : i32
    %c0_i32 = arith.constant 0 : i32
    %2 = arith.minsi %1, %c0_i32 : i32
    %c0_i32_0 = arith.constant 0 : i32
    %c0_i32_1 = arith.constant 0 : i32
    return %2, %c0_i32_0 : i32, i32
  }
  func.func @transform_1(%arg0: i32, %arg1: i32) -> (i32, i32) {
    %c1_i32 = arith.constant 1 : i32
    %0 = arith.muli %arg0, %c1_i32 : i32
    %1 = arith.addi %0, %arg1 : i32
    %c0_i32 = arith.constant 0 : i32
    %2 = arith.minsi %1, %c0_i32 : i32
    %c0_i32_0 = arith.constant 0 : i32
    %c0_i32_1 = arith.constant 0 : i32
    return %2, %c0_i32_0 : i32, i32
  }
  func.func @transform_2(%arg0: i32, %arg1: i32) -> (i32, i32, i32, i32) {
    %c0_i32 = arith.constant 0 : i32
    %c0_i32_0 = arith.constant 0 : i32
    %c0_i32_1 = arith.constant 0 : i32
    %c0_i32_2 = arith.constant 0 : i32
    return %arg0, %c0_i32, %c0_i32_0, %c0_i32_1 : i32, i32, i32, i32
  }
}

</mosaic_0001>

<llo_original>
// kernel: tpu_custom_call.1
$region0: #{tpu_custom_call.1}
  #allocation0 [shape = 'u32[]', space=smem, size = 0x4, offset = 0x4, fixed_abs, tag = 'smem constant byte address 0x4 - core index']
  #allocation1 [shape = 'u32[72,128]{1,0:T(1,128)}', space=vmem, size = 0x9000, scoped, tag = 'internal scratch']
  %s0 = inlined_call_operand.hbm [shape: f32[16,128], index: 0, kind: input, shape index: {}]
  %s1 = inlined_call_operand.hbm [shape: f32[16,128], index: 1, kind: input, shape index: {}]
  %s2 = inlined_call_operand.hbm [shape: f32[1,3,8,128], index: 2, kind: output, shape index: {}]
  %s3 = sld [smem:[#allocation0]]
  $region30: #{tpu_custom_call.1} parent=0
    _
  %s5 = ssub.s32 1, %s3
  %s6 = scalar_select 0, %s5, %s3
  $region1: #{tpu_custom_call.1} parent=0
    #allocation2 [shape = 'u8[8192]{0}', space=vmem, size = 0x2000, scoped, tag = 'input window, operand 0, single buffered']
    #allocation3 [shape = 's32[1]{0}', space=sflag, size = 0x4, scoped, tag = 'scoped memory for tpu_custom_call.1']
    #allocation4 [shape = 's32[1]{0}', space=sflag, size = 0x4, scoped, tag = 'scoped memory for tpu_custom_call.1']
    #allocation5 [shape = 'u8[8192]{0}', space=vmem, size = 0x2000, scoped, tag = 'input window, operand 1, single buffered']
    #allocation6 [shape = 's32[1]{0}', space=sflag, size = 0x4, scoped, tag = 'scoped memory for tpu_custom_call.1']
    #allocation7 [shape = 'u8[12288]{0}', space=vmem, size = 0x3000, scoped, tag = 'output window, operand 0, single buffered']
    %7 = vsyncpa [#allocation3], 0
    %8 = vsyncpa [#allocation6], 0
    %9 = vsyncpa [#allocation4], 0
    // Predicated region
    $region2: #{tpu_custom_call.1} parent=1 // pred_check
      _
    $region3: #{tpu_custom_call.1} parent=1 // pred_check_branch
      %11 = sbr.rel (0) target = $region5
    $region4: #{tpu_custom_call.1} parent=1 // pred_region
      %s12 = sadd.s32 0, 0
      %p13 = scmp.lt.s32.totalorder %s12, 0
      %s14 = scalar_select %p13, %s12, 0
      %s15 = smul.u32 2, %s14
      %17 = vsyncadd [#allocation3], 0
      %s18 = smul.addr %s15, 8
      %s19 = scalar_lea.hbm %s0, %s18
      %s20 = sshll.u32 %s19, 4
      %s21 = int_to_ptr.hbm [resolvable:$true] %s20
      %s22 = sshll.u32 [#allocation2], 4
      %s23 = int_to_ptr.vmem [resolvable:$true] %s22
      %28 = dma.hbm_to_vmem [thread:$0]  %s21, 256, %s23, [#allocation3], 128, 128, 8
    $region5: #{tpu_custom_call.1} parent=1 // pred_fallthru
      _
    // Predicated region
    $region6: #{tpu_custom_call.1} parent=1 // pred_check
      _
    $region7: #{tpu_custom_call.1} parent=1 // pred_check_branch
      %30 = sbr.rel (0) target = $region9
    $region8: #{tpu_custom_call.1} parent=1 // pred_region
      %s31 = sadd.s32 0, 0
      %p32 = scmp.lt.s32.totalorder %s31, 0
      %s33 = scalar_select %p32, %s31, 0
      %s34 = smul.u32 2, %s33
      %36 = vsyncadd [#allocation6], 0
      %s37 = smul.addr %s34, 8
      %s38 = scalar_lea.hbm %s1, %s37
      %s39 = sshll.u32 %s38, 4
      %s40 = int_to_ptr.hbm [resolvable:$true] %s39
      %s41 = sshll.u32 [#allocation5], 4
      %s42 = int_to_ptr.vmem [resolvable:$true] %s41
      %47 = dma.hbm_to_vmem [thread:$0]  %s40, 256, %s42, [#allocation6], 128, 128, 8
    $region9: #{tpu_custom_call.1} parent=1 // pred_fallthru
      _
    // Predicated region
    $region10: #{tpu_custom_call.1} parent=1 // pred_check
      _
    $region11: #{tpu_custom_call.1} parent=1 // pred_check_branch
      %49 = sbr.rel (0) target = $region13
    $region12: #{tpu_custom_call.1} parent=1 // pred_region
      %51 = dma.done [#allocation3], 256
    $region13: #{tpu_custom_call.1} parent=1 // pred_fallthru
      _
    // Predicated region
    $region14: #{tpu_custom_call.1} parent=1 // pred_check
      _
    $region15: #{tpu_custom_call.1} parent=1 // pred_check_branch
      %53 = sbr.rel (0) target = $region17
    $region16: #{tpu_custom_call.1} parent=1 // pred_region
      %55 = dma.done [#allocation6], 256
    $region17: #{tpu_custom_call.1} parent=1 // pred_fallthru
      _
    %s56 = sadd.s32 0, 0
    %p57 = scmp.lt.s32.totalorder %s56, 0
    %s58 = scalar_select %p57, %s56, 0
    %s59 = smul.u32 2, %s58
    %s60 = sadd.s32 0, 0
    %p61 = scmp.lt.s32.totalorder %s60, 0
    %s62 = scalar_select %p61, %s60, 0
    %s63 = smul.u32 2, %s62
    %p64 = scmp.eq.s32.totalorder 0, 0
    // Predicated region
    $region18: #{tpu_custom_call.1} parent=1 // pred_check
      %p65 = pneg %p64
    $region19: #{tpu_custom_call.1} parent=1 // pred_check_branch
      %67 = sbr.rel (%p65) target = $region21
    $region20: #{tpu_custom_call.1} parent=1 // pred_region
      %68 = vst [vmem:[#allocation7] sm:$0xff] 0.0
      %69 = vst [vmem:[#allocation7 + $0x8] sm:$0xff] 0.0
      %70 = vst [vmem:[#allocation7 + $0x10] sm:$0xff] 0.0
    $region21: #{tpu_custom_call.1} parent=1 // pred_fallthru
      _
    %v71 = vld [vmem:[#allocation2] sm:$0xff]
    %v72 = vld [vmem:[#allocation2 + $0x8] sm:$0xff]
    %v73 = vld [vmem:[#allocation5] sm:$0xff]
    %v74 = vld [vmem:[#allocation5 + $0x8] sm:$0xff]
    %v75 = vand.u32 2147483647, %v71
    %v76 = vand.u32 2147483647, %v72
    %v77 = vsub.f32 0.0, %v75
    %v78 = vsub.f32 0.0, %v76
    %v79 = vmul.f32 %v77, 1.442695
    %v80 = vpow.pop %v79
    %v81 = vmul.f32 %v78, 1.442695
    %v82 = vpow.pop %v81
    %v83 = vadd.f32 %v80, 1.0
    %v84 = vadd.f32 %v82, 1.0
    %v85 = vrcp.pop %v83
    %v86 = vmul.f32 %v83, %v85
    %v87 = vsub.f32 1.0, %v86
    %v88 = vmul.f32 %v85, %v87
    %v89 = vadd.f32 %v85, %v88
    %vm90 = vweird.f32 %v83
    %vm91 = vweird.f32 %v85
    %vm92 = vmor %vm90, %vm91
    %v93 = vsel %vm92, %v85, %v89
    %v94 = vand.u32 2147483647, %v83
    %vm95 = vcmp.eq.f32.partialorder %v94, 8.507059e+37
    %v96 = vand.u32 %v83, 2147483648
    %v97 = vor.u32 1.1754944e-38, %v96
    %v98 = vsel %vm95, %v97, %v93
    %v99 = vrcp.pop %v84
    %v100 = vmul.f32 %v84, %v99
    %v101 = vsub.f32 1.0, %v100
    %v102 = vmul.f32 %v99, %v101
    %v103 = vadd.f32 %v99, %v102
    %vm104 = vweird.f32 %v84
    %vm105 = vweird.f32 %v99
    %vm106 = vmor %vm104, %vm105
    %v107 = vsel %vm106, %v99, %v103
    %v108 = vand.u32 2147483647, %v84
    %vm109 = vcmp.eq.f32.partialorder %v108, 8.507059e+37
    %v110 = vand.u32 %v84, 2147483648
    %v111 = vor.u32 1.1754944e-38, %v110
    %v112 = vsel %vm109, %v111, %v107
    %vm113 = vcmp.ge.f32.partialorder %v71, 0.0
    %vm114 = vcmp.ge.f32.partialorder %v72, 0.0
    %v115 = vmul.f32 %v80, %v98
    %v116 = vmul.f32 %v82, %v112
    %v117 = vsel %vm113, %v98, %v115
    %v118 = vsel %vm114, %v112, %v116
    %v119 = vmax.f32 %v71, 0.0
    %v120 = vmax.f32 %v72, 0.0
    %v121 = vmul.f32 %v71, %v73
    %v122 = vmul.f32 %v72, %v74
    %v123 = vsub.f32 %v119, %v121
    %v124 = vsub.f32 %v120, %v122
    %v125 = vadd.f32 %v80, 1.0
    %v126 = vlog2.pop %v125
    %v127 = vmul.f32 %v126, 0.6931472
    %v128 = vmul.f32 -0.5, %v80
    %v129 = vadd.f32 %v128, 1.0
    %v130 = vmul.f32 %v129, %v80
    %v131 = vand.u32 2147483647, %v80
    %vm132 = vcmp.lt.f32.partialorder %v131, 0.0004427343
    %v133 = vsel %vm132, %v130, %v127
    %v134 = vadd.f32 %v82, 1.0
    %v135 = vlog2.pop %v134
    %v136 = vmul.f32 %v135, 0.6931472
    %v137 = vmul.f32 -0.5, %v82
    %v138 = vadd.f32 %v137, 1.0
    %v139 = vmul.f32 %v138, %v82
    %v140 = vand.u32 2147483647, %v82
    %vm141 = vcmp.lt.f32.partialorder %v140, 0.0004427343
    %v142 = vsel %vm141, %v139, %v136
    %v143 = vadd.f32 %v123, %v133
    %v144 = vadd.f32 %v124, %v142
    %v145 = vmul.f32 %v117, %v73
    %v146 = vmul.f32 %v118, %v74
    %v147 = vadd.f32 %v145, %v146
    %v148 = vadd.f32 %v147, 0.0
    %v149 = vadd.f32 %v117, %v73
    %v150 = vadd.f32 %v118, %v74
    %v151 = vadd.f32 %v149, %v150
    %v152 = vadd.f32 %v151, 0.0
    %v153 = vadd.f32 %v143, %v144
    %v154 = vadd.f32 %v153, 0.0
    %v155 = vld [vmem:[#allocation7] sm:$0xff]
    %v156 = vadd.f32 %v155, %v148
    %157 = vst [vmem:[#allocation7] sm:$0xff] %v156
    %s158 = scalar_lea.vmem [#allocation7], 8
    %v159 = vld [vmem:[%s158] sm:$0xff]
    %v160 = vadd.f32 %v159, %v152
    %161 = vst [vmem:[%s158] sm:$0xff] %v160
    %s162 = scalar_lea.vmem [#allocation7], 16
    %v163 = vld [vmem:[%s162] sm:$0xff]
    %v164 = vadd.f32 %v163, %v154
    %165 = vst [vmem:[%s162] sm:$0xff] %v164
    // Predicated region
    $region22: #{tpu_custom_call.1} parent=1 // pred_check
      _
    $region23: #{tpu_custom_call.1} parent=1 // pred_check_branch
      %167 = sbr.rel (0) target = $region25
    $region24: #{tpu_custom_call.1} parent=1 // pred_region
      %169 = vsyncadd [#allocation4], 0
      %s170 = sshll.u32 [#allocation7], 4
      %s171 = int_to_ptr.vmem [resolvable:$true] %s170
      %s172 = sshll.u32 %s2, 4
      %s173 = int_to_ptr.hbm [resolvable:$true] %s172
      %178 = dma.vmem_to_hbm [thread:$0]  %s171, 384, %s173, [#allocation4], 128, 128, 8
    $region25: #{tpu_custom_call.1} parent=1 // pred_fallthru
      _
    // Predicated region
    $region26: #{tpu_custom_call.1} parent=1 // pred_check
      _
    $region27: #{tpu_custom_call.1} parent=1 // pred_check_branch
      %180 = sbr.rel (0) target = $region29
    $region28: #{tpu_custom_call.1} parent=1 // pred_region
      %182 = dma.done [#allocation4], 384
    $region29: #{tpu_custom_call.1} parent=1 // pred_fallthru
      _
    %183 = vsyncpa [#allocation3], 1
    %184 = vsyncpa [#allocation6], 1
    %185 = vsyncpa [#allocation4], 1

</llo_original>
